<compile_context>
chip_gen: v5e
topology: v5e:2x2
jax: 0.10.0
libtpu: 0.0.40
codegen_flags: <defaults>
</compile_context>

<pallas_src>
import math
from functools import partial

import jax
import jax.numpy as jnp
from jax.experimental import pallas as pl
from jax.experimental.pallas import tpu as pltpu


def full_attention_kernel(x_ref, wqkv_ref, wo_ref, bo_ref, o_ref, *,
                          heads, dim_head):
    bb, n, dim = x_ref.shape               # block: (batch_block, N, DIM)
    inner = heads * dim_head
    cdt = x_ref.dtype                      # MXU compute dtype (bf16)

    # ---- fused QKV projection (one MXU matmul, f32 accumulate) -------------
    x2 = x_ref[...].reshape(bb * n, dim)                               # (T, DIM)
    qkv = jnp.dot(x2, wqkv_ref[...], preferred_element_type=jnp.float32)
    qkv = qkv.astype(cdt).reshape(bb, n, 3 * inner)

    # 1/sqrt(dim_head) is already folded into the Q columns of wqkv.
    q = qkv[:, :, 0 * inner:1 * inner]                                 # (Bb, N, H*D)
    k = qkv[:, :, 1 * inner:2 * inner]
    v = qkv[:, :, 2 * inner:3 * inner]

    head_outs = []
    for h in range(heads):
        lo = h * dim_head
        hi = lo + dim_head
        qh = q[:, :, lo:hi]                                            # (Bb, N, D)
        kh = k[:, :, lo:hi]
        vh = v[:, :, lo:hi]

        # Batched over the Bb axis, contraction on the last dim of both
        # operands -> no materialized K transpose.
        logits = jnp.einsum('bnd,bmd->bnm', qh, kh,
                            preferred_element_type=jnp.float32)        # (Bb, N, N)

        # Numerically stable softmax, all math in f32.
        m = jnp.max(logits, axis=-1, keepdims=True)
        p = jnp.exp(logits - m)

        # Unnormalized P @ V; fold the reciprocal of the row-sum into the
        # small (Bb, N, D) output (EUP approx reciprocal, nearly free).
        pv = jnp.einsum('bnm,bmd->bnd', p.astype(cdt), vh,
                        preferred_element_type=jnp.float32)            # (Bb, N, D)
        inv_l = pl.reciprocal(jnp.sum(p, axis=-1, keepdims=True), approx=True)
        head_outs.append(pv * inv_l)

    attn = jnp.concatenate(head_outs, axis=-1)                          # (Bb, N, H*D) f32

    # ---- output projection (with bias, f32 accumulate) ---------------------
    attn2 = attn.astype(cdt).reshape(bb * n, inner)
    out = jnp.dot(attn2, wo_ref[...], preferred_element_type=jnp.float32)
    out = out + bo_ref[...]                                             # bias in f32
    # dropout(p=0.0) is the identity.
    o_ref[...] = out.reshape(bb, n, dim).astype(o_ref.dtype)


def _pick_batch_block(b):
    # Amortize per-grid-step overhead while keeping >= 2 grid steps so the
    # parallel axis can shard across v7x's 2 TensorCores.
    for bb in (8, 4, 2):
        if b % bb == 0 and b // bb >= 2:
            return bb
    return 1


def full_attention(x, wq, wk, wv, wo, bo, *, heads, dim_head,
                   compute_dtype=jnp.bfloat16, batch_block=None):
    b, n, dim = x.shape
    inner = heads * dim_head
    assert wq.shape == (dim, inner) and wk.shape == (dim, inner)
    assert wv.shape == (dim, inner)
    assert wo.shape == (inner, dim) and bo.shape == (1, dim)

    # Fold the attention scale into Wq and fuse the three projections into a
    # single (DIM, 3*inner) weight; cast MXU operands to the compute dtype.
    scale = 1.0 / math.sqrt(float(dim_head))
    wqkv = jnp.concatenate([wq * scale, wk, wv], axis=1).astype(compute_dtype)
    x_c = x.astype(compute_dtype)
    wo_c = wo.astype(compute_dtype)
    bo_f32 = bo.astype(jnp.float32)

    if batch_block is None:
        batch_block = _pick_batch_block(b)
    assert b % batch_block == 0
    grid = (b // batch_block,)

    kernel = partial(full_attention_kernel, heads=heads, dim_head=dim_head)

    # Advisory cost estimate for XLA's scheduler.
    flops = 2 * b * n * (dim * 3 * inner + 2 * n * inner + inner * dim)
    bytes_accessed = (x_c.size * x_c.dtype.itemsize
                      + wqkv.size * wqkv.dtype.itemsize
                      + wo_c.size * wo_c.dtype.itemsize
                      + bo_f32.size * bo_f32.dtype.itemsize
                      + b * n * dim * x.dtype.itemsize)
    cost = pl.CostEstimate(flops=flops,
                           transcendentals=b * heads * n * n,
                           bytes_accessed=bytes_accessed)

    # NOTE: weight specs have constant index maps; on v7x they could be
    # single-buffered (pipeline_mode) to save VMEM at large model dims.
    return pl.pallas_call(
        kernel,
        out_shape=jax.ShapeDtypeStruct((b, n, dim), x.dtype),
        grid_spec=pltpu.PrefetchScalarGridSpec(
            num_scalar_prefetch=0,
            grid=grid,
            in_specs=[
                pl.BlockSpec((batch_block, n, dim), lambda i: (i, 0, 0)),  # x
                pl.BlockSpec((dim, 3 * inner), lambda i: (0, 0)),          # Wqkv (fused, Q pre-scaled)
                pl.BlockSpec((inner, dim), lambda i: (0, 0)),              # Wo
                pl.BlockSpec((1, dim), lambda i: (0, 0)),                  # bo
            ],
            out_specs=pl.BlockSpec((batch_block, n, dim), lambda i: (i, 0, 0)),
        ),
        compiler_params=pltpu.CompilerParams(
            dimension_semantics=("parallel",)),
        cost_estimate=cost,
    )(x_c, wqkv, wo_c, bo_f32)


def full_attention_ref(x, wq, wk, wv, wo, bo, *, heads, dim_head):
    """Pure-JAX f32 reference matching the PyTorch forward."""
    b, n, dim = x.shape
    q = x @ wq
    k = x @ wk
    v = x @ wv

    def split(t):  # b n (h d) -> b h n d
        return t.reshape(b, n, heads, dim_head).transpose(0, 2, 1, 3)

    q, k, v = split(q), split(k), split(v)
    logits = jnp.einsum('bhxd,bhyd->bhxy', q, k) / jnp.sqrt(jnp.float32(dim_head))
    w = jax.nn.softmax(logits, axis=-1)
    out = jnp.einsum('bhnx,bhxd->bhnd', w, v)
    out = out.transpose(0, 2, 1, 3).reshape(b, n, heads * dim_head)
    return out @ wo + bo[0]


if __name__ == "__main__":
    # Small shapes consistent with the module.
    B, N, DIM = 2, 8, 32
    HEADS, DIM_HEAD = 4, 8                     # inner_dim = 32
    INNER = HEADS * DIM_HEAD

    key = jax.random.PRNGKey(0)
    kx, kq, kk, kv, ko, kb = jax.random.split(key, 6)

    x = jax.random.normal(kx, (B, N, DIM), dtype=jnp.float32)

    # Deterministic "Linear" parameters, stored as [in, out] (torch W.T).
    s_in = 1.0 / math.sqrt(DIM)
    s_inner = 1.0 / math.sqrt(INNER)
    wq = jax.random.uniform(kq, (DIM, INNER), jnp.float32, -s_in, s_in)
    wk = jax.random.uniform(kk, (DIM, INNER), jnp.float32, -s_in, s_in)
    wv = jax.random.uniform(kv, (DIM, INNER), jnp.float32, -s_in, s_in)
    wo = jax.random.uniform(ko, (INNER, DIM), jnp.float32, -s_inner, s_inner)
    bo = jax.random.uniform(kb, (1, DIM), jnp.float32, -s_inner, s_inner)

    out = full_attention(x, wq, wk, wv, wo, bo, heads=HEADS, dim_head=DIM_HEAD)
    out = jax.block_until_ready(out)

    ref = full_attention_ref(x, wq, wk, wv, wo, bo, heads=HEADS, dim_head=DIM_HEAD)
    assert out.shape == (B, N, DIM)
    # bf16 MXU inputs (f32 accumulate) + approx EUP reciprocal -> relaxed tol
    # vs. the pure-f32 reference.
    assert jnp.allclose(out, ref, atol=3e-2, rtol=3e-2), "mismatch vs JAX reference"

    print("KERNEL_OK")
</pallas_src>

<mosaic_0001>
module attributes {stable_mosaic.version = 11 : i64} {
  func.func @full_attention_kernel(%arg0: i32, %arg1: memref<1x8x32xbf16, #tpu.memory_space<vmem>>, %arg2: memref<32x96xbf16, #tpu.memory_space<vmem>>, %arg3: memref<32x32xbf16, #tpu.memory_space<vmem>>, %arg4: memref<1x32xf32, #tpu.memory_space<vmem>>, %arg5: memref<1x8x32xf32, #tpu.memory_space<vmem>>) attributes {dimension_semantics = [#tpu.dimension_semantics<parallel>], iteration_bounds = array<i64: 2>, scalar_prefetch = 0 : i64, scratch_operands = 0 : i64, tpu.core_type = #tpu.core_type<tc>, window_params = [{transform_indices = @transform_0, window_bounds = array<i64: 1, 8, 32>}, {pipeline_mode = #tpu.pipeline_mode<synchronous>, transform_indices = @transform_1, window_bounds = array<i64: 32, 96>}, {pipeline_mode = #tpu.pipeline_mode<synchronous>, transform_indices = @transform_2, window_bounds = array<i64: 32, 32>}, {pipeline_mode = #tpu.pipeline_mode<synchronous>, transform_indices = @transform_3, window_bounds = array<i64: 1, 32>}, {transform_indices = @transform_4, window_bounds = array<i64: 1, 8, 32>}]} {
    %c0 = arith.constant 0 : index
    %c0_0 = arith.constant 0 : index
    %c0_1 = arith.constant 0 : index
    %0 = vector.load %arg1[%c0, %c0_0, %c0_1] : memref<1x8x32xbf16, #tpu.memory_space<vmem>>, vector<1x8x32xbf16>
    %1 = vector.shape_cast %0 : vector<1x8x32xbf16> to vector<8x32xbf16>
    %c0_2 = arith.constant 0 : index
    %c0_3 = arith.constant 0 : index
    %2 = vector.load %arg2[%c0_2, %c0_3] : memref<32x96xbf16, #tpu.memory_space<vmem>>, vector<32x96xbf16>
    %cst = arith.constant dense<0.000000e+00> : vector<8x96xf32>
    %3 = tpu.matmul %1, %2, %cst {dimension_numbers = #tpu.dot_dimension_numbers<[1], [0], [0], [1], [0, 0, 1, 1], [], []>} : vector<8x32xbf16>, vector<32x96xbf16>, vector<8x96xf32> -> vector<8x96xf32>
    %4 = arith.truncf %3 : vector<8x96xf32> to vector<8x96xbf16>
    %5 = vector.shape_cast %4 : vector<8x96xbf16> to vector<1x8x96xbf16>
    %6 = vector.extract_strided_slice %5 {offsets = [0, 0, 0], sizes = [1, 8, 32], strides = [1, 1, 1]} : vector<1x8x96xbf16> to vector<1x8x32xbf16>
    %7 = vector.extract_strided_slice %5 {offsets = [0, 0, 32], sizes = [1, 8, 32], strides = [1, 1, 1]} : vector<1x8x96xbf16> to vector<1x8x32xbf16>
    %8 = vector.extract_strided_slice %5 {offsets = [0, 0, 64], sizes = [1, 8, 32], strides = [1, 1, 1]} : vector<1x8x96xbf16> to vector<1x8x32xbf16>
    %9 = vector.extract_strided_slice %6 {offsets = [0, 0, 0], sizes = [1, 8, 8], strides = [1, 1, 1]} : vector<1x8x32xbf16> to vector<1x8x8xbf16>
    %10 = vector.extract_strided_slice %7 {offsets = [0, 0, 0], sizes = [1, 8, 8], strides = [1, 1, 1]} : vector<1x8x32xbf16> to vector<1x8x8xbf16>
    %11 = vector.extract_strided_slice %8 {offsets = [0, 0, 0], sizes = [1, 8, 8], strides = [1, 1, 1]} : vector<1x8x32xbf16> to vector<1x8x8xbf16>
    "tpu.trace_start"() <{level = 10 : i32, message = "bnd,bmd->bnm"}> : () -> ()
    %cst_4 = arith.constant dense<0.000000e+00> : vector<1x8x8xf32>
    %12 = tpu.matmul %9, %10, %cst_4 {dimension_numbers = #tpu.dot_dimension_numbers<[2], [2], [1], [1], [0, 0, 0, 1, 1, 1], [0], [0]>} : vector<1x8x8xbf16>, vector<1x8x8xbf16>, vector<1x8x8xf32> -> vector<1x8x8xf32>
    "tpu.trace_stop"() : () -> ()
    %cst_5 = arith.constant dense<0xFF800000> : vector<1x8xf32>
    %13 = vector.multi_reduction <maximumf>, %12, %cst_5 [2] : vector<1x8x8xf32> to vector<1x8xf32>
    %14 = vector.shape_cast %13 : vector<1x8xf32> to vector<1x8x1xf32>
    %15 = vector.broadcast %14 : vector<1x8x1xf32> to vector<1x8x8xf32>
    %16 = arith.subf %12, %15 : vector<1x8x8xf32>
    %17 = math.exp %16 : vector<1x8x8xf32>
    %18 = arith.truncf %17 : vector<1x8x8xf32> to vector<1x8x8xbf16>
    "tpu.trace_start"() <{level = 10 : i32, message = "bnm,bmd->bnd"}> : () -> ()
    %cst_6 = arith.constant dense<0.000000e+00> : vector<1x8x8xf32>
    %19 = tpu.matmul %18, %11, %cst_6 {dimension_numbers = #tpu.dot_dimension_numbers<[2], [1], [1], [2], [0, 0, 0, 1, 1, 2], [0], [0]>} : vector<1x8x8xbf16>, vector<1x8x8xbf16>, vector<1x8x8xf32> -> vector<1x8x8xf32>
    "tpu.trace_stop"() : () -> ()
    %cst_7 = arith.constant dense<0.000000e+00> : vector<1x8xf32>
    %20 = vector.multi_reduction <add>, %17, %cst_7 [2] : vector<1x8x8xf32> to vector<1x8xf32>
    %21 = vector.shape_cast %20 : vector<1x8xf32> to vector<1x8x1xf32>
    %22 = tpu.reciprocal %21 {approx = true} : vector<1x8x1xf32> -> vector<1x8x1xf32>
    %23 = vector.broadcast %22 : vector<1x8x1xf32> to vector<1x8x8xf32>
    %24 = arith.mulf %19, %23 : vector<1x8x8xf32>
    %25 = vector.extract_strided_slice %6 {offsets = [0, 0, 8], sizes = [1, 8, 8], strides = [1, 1, 1]} : vector<1x8x32xbf16> to vector<1x8x8xbf16>
    %26 = vector.extract_strided_slice %7 {offsets = [0, 0, 8], sizes = [1, 8, 8], strides = [1, 1, 1]} : vector<1x8x32xbf16> to vector<1x8x8xbf16>
    %27 = vector.extract_strided_slice %8 {offsets = [0, 0, 8], sizes = [1, 8, 8], strides = [1, 1, 1]} : vector<1x8x32xbf16> to vector<1x8x8xbf16>
    "tpu.trace_start"() <{level = 10 : i32, message = "bnd,bmd->bnm"}> : () -> ()
    %cst_8 = arith.constant dense<0.000000e+00> : vector<1x8x8xf32>
    %28 = tpu.matmul %25, %26, %cst_8 {dimension_numbers = #tpu.dot_dimension_numbers<[2], [2], [1], [1], [0, 0, 0, 1, 1, 1], [0], [0]>} : vector<1x8x8xbf16>, vector<1x8x8xbf16>, vector<1x8x8xf32> -> vector<1x8x8xf32>
    "tpu.trace_stop"() : () -> ()
    %cst_9 = arith.constant dense<0xFF800000> : vector<1x8xf32>
    %29 = vector.multi_reduction <maximumf>, %28, %cst_9 [2] : vector<1x8x8xf32> to vector<1x8xf32>
    %30 = vector.shape_cast %29 : vector<1x8xf32> to vector<1x8x1xf32>
    %31 = vector.broadcast %30 : vector<1x8x1xf32> to vector<1x8x8xf32>
    %32 = arith.subf %28, %31 : vector<1x8x8xf32>
    %33 = math.exp %32 : vector<1x8x8xf32>
    %34 = arith.truncf %33 : vector<1x8x8xf32> to vector<1x8x8xbf16>
    "tpu.trace_start"() <{level = 10 : i32, message = "bnm,bmd->bnd"}> : () -> ()
    %cst_10 = arith.constant dense<0.000000e+00> : vector<1x8x8xf32>
    %35 = tpu.matmul %34, %27, %cst_10 {dimension_numbers = #tpu.dot_dimension_numbers<[2], [1], [1], [2], [0, 0, 0, 1, 1, 2], [0], [0]>} : vector<1x8x8xbf16>, vector<1x8x8xbf16>, vector<1x8x8xf32> -> vector<1x8x8xf32>
    "tpu.trace_stop"() : () -> ()
    %cst_11 = arith.constant dense<0.000000e+00> : vector<1x8xf32>
    %36 = vector.multi_reduction <add>, %33, %cst_11 [2] : vector<1x8x8xf32> to vector<1x8xf32>
    %37 = vector.shape_cast %36 : vector<1x8xf32> to vector<1x8x1xf32>
    %38 = tpu.reciprocal %37 {approx = true} : vector<1x8x1xf32> -> vector<1x8x1xf32>
    %39 = vector.broadcast %38 : vector<1x8x1xf32> to vector<1x8x8xf32>
    %40 = arith.mulf %35, %39 : vector<1x8x8xf32>
    %41 = vector.extract_strided_slice %6 {offsets = [0, 0, 16], sizes = [1, 8, 8], strides = [1, 1, 1]} : vector<1x8x32xbf16> to vector<1x8x8xbf16>
    %42 = vector.extract_strided_slice %7 {offsets = [0, 0, 16], sizes = [1, 8, 8], strides = [1, 1, 1]} : vector<1x8x32xbf16> to vector<1x8x8xbf16>
    %43 = vector.extract_strided_slice %8 {offsets = [0, 0, 16], sizes = [1, 8, 8], strides = [1, 1, 1]} : vector<1x8x32xbf16> to vector<1x8x8xbf16>
    "tpu.trace_start"() <{level = 10 : i32, message = "bnd,bmd->bnm"}> : () -> ()
    %cst_12 = arith.constant dense<0.000000e+00> : vector<1x8x8xf32>
    %44 = tpu.matmul %41, %42, %cst_12 {dimension_numbers = #tpu.dot_dimension_numbers<[2], [2], [1], [1], [0, 0, 0, 1, 1, 1], [0], [0]>} : vector<1x8x8xbf16>, vector<1x8x8xbf16>, vector<1x8x8xf32> -> vector<1x8x8xf32>
    "tpu.trace_stop"() : () -> ()
    %cst_13 = arith.constant dense<0xFF800000> : vector<1x8xf32>
    %45 = vector.multi_reduction <maximumf>, %44, %cst_13 [2] : vector<1x8x8xf32> to vector<1x8xf32>
    %46 = vector.shape_cast %45 : vector<1x8xf32> to vector<1x8x1xf32>
    %47 = vector.broadcast %46 : vector<1x8x1xf32> to vector<1x8x8xf32>
    %48 = arith.subf %44, %47 : vector<1x8x8xf32>
    %49 = math.exp %48 : vector<1x8x8xf32>
    %50 = arith.truncf %49 : vector<1x8x8xf32> to vector<1x8x8xbf16>
    "tpu.trace_start"() <{level = 10 : i32, message = "bnm,bmd->bnd"}> : () -> ()
    %cst_14 = arith.constant dense<0.000000e+00> : vector<1x8x8xf32>
    %51 = tpu.matmul %50, %43, %cst_14 {dimension_numbers = #tpu.dot_dimension_numbers<[2], [1], [1], [2], [0, 0, 0, 1, 1, 2], [0], [0]>} : vector<1x8x8xbf16>, vector<1x8x8xbf16>, vector<1x8x8xf32> -> vector<1x8x8xf32>
    "tpu.trace_stop"() : () -> ()
    %cst_15 = arith.constant dense<0.000000e+00> : vector<1x8xf32>
    %52 = vector.multi_reduction <add>, %49, %cst_15 [2] : vector<1x8x8xf32> to vector<1x8xf32>
    %53 = vector.shape_cast %52 : vector<1x8xf32> to vector<1x8x1xf32>
    %54 = tpu.reciprocal %53 {approx = true} : vector<1x8x1xf32> -> vector<1x8x1xf32>
    %55 = vector.broadcast %54 : vector<1x8x1xf32> to vector<1x8x8xf32>
    %56 = arith.mulf %51, %55 : vector<1x8x8xf32>
    %57 = vector.extract_strided_slice %6 {offsets = [0, 0, 24], sizes = [1, 8, 8], strides = [1, 1, 1]} : vector<1x8x32xbf16> to vector<1x8x8xbf16>
    %58 = vector.extract_strided_slice %7 {offsets = [0, 0, 24], sizes = [1, 8, 8], strides = [1, 1, 1]} : vector<1x8x32xbf16> to vector<1x8x8xbf16>
    %59 = vector.extract_strided_slice %8 {offsets = [0, 0, 24], sizes = [1, 8, 8], strides = [1, 1, 1]} : vector<1x8x32xbf16> to vector<1x8x8xbf16>
    "tpu.trace_start"() <{level = 10 : i32, message = "bnd,bmd->bnm"}> : () -> ()
    %cst_16 = arith.constant dense<0.000000e+00> : vector<1x8x8xf32>
    %60 = tpu.matmul %57, %58, %cst_16 {dimension_numbers = #tpu.dot_dimension_numbers<[2], [2], [1], [1], [0, 0, 0, 1, 1, 1], [0], [0]>} : vector<1x8x8xbf16>, vector<1x8x8xbf16>, vector<1x8x8xf32> -> vector<1x8x8xf32>
    "tpu.trace_stop"() : () -> ()
    %cst_17 = arith.constant dense<0xFF800000> : vector<1x8xf32>
    %61 = vector.multi_reduction <maximumf>, %60, %cst_17 [2] : vector<1x8x8xf32> to vector<1x8xf32>
    %62 = vector.shape_cast %61 : vector<1x8xf32> to vector<1x8x1xf32>
    %63 = vector.broadcast %62 : vector<1x8x1xf32> to vector<1x8x8xf32>
    %64 = arith.subf %60, %63 : vector<1x8x8xf32>
    %65 = math.exp %64 : vector<1x8x8xf32>
    %66 = arith.truncf %65 : vector<1x8x8xf32> to vector<1x8x8xbf16>
    "tpu.trace_start"() <{level = 10 : i32, message = "bnm,bmd->bnd"}> : () -> ()
    %cst_18 = arith.constant dense<0.000000e+00> : vector<1x8x8xf32>
    %67 = tpu.matmul %66, %59, %cst_18 {dimension_numbers = #tpu.dot_dimension_numbers<[2], [1], [1], [2], [0, 0, 0, 1, 1, 2], [0], [0]>} : vector<1x8x8xbf16>, vector<1x8x8xbf16>, vector<1x8x8xf32> -> vector<1x8x8xf32>
    "tpu.trace_stop"() : () -> ()
    %cst_19 = arith.constant dense<0.000000e+00> : vector<1x8xf32>
    %68 = vector.multi_reduction <add>, %65, %cst_19 [2] : vector<1x8x8xf32> to vector<1x8xf32>
    %69 = vector.shape_cast %68 : vector<1x8xf32> to vector<1x8x1xf32>
    %70 = tpu.reciprocal %69 {approx = true} : vector<1x8x1xf32> -> vector<1x8x1xf32>
    %71 = vector.broadcast %70 : vector<1x8x1xf32> to vector<1x8x8xf32>
    %72 = arith.mulf %67, %71 : vector<1x8x8xf32>
    %73 = tpu.concatenate %24, %40, %56, %72 in 2 : vector<1x8x8xf32>, vector<1x8x8xf32>, vector<1x8x8xf32>, vector<1x8x8xf32> -> vector<1x8x32xf32>
    %74 = arith.truncf %73 : vector<1x8x32xf32> to vector<1x8x32xbf16>
    %75 = vector.shape_cast %74 : vector<1x8x32xbf16> to vector<8x32xbf16>
    %c0_20 = arith.constant 0 : index
    %c0_21 = arith.constant 0 : index
    %76 = vector.load %arg3[%c0_20, %c0_21] : memref<32x32xbf16, #tpu.memory_space<vmem>>, vector<32x32xbf16>
    %cst_22 = arith.constant dense<0.000000e+00> : vector<8x32xf32>
    %77 = tpu.matmul %75, %76, %cst_22 {dimension_numbers = #tpu.dot_dimension_numbers<[1], [0], [0], [1], [0, 0, 1, 1], [], []>} : vector<8x32xbf16>, vector<32x32xbf16>, vector<8x32xf32> -> vector<8x32xf32>
    %c0_23 = arith.constant 0 : index
    %c0_24 = arith.constant 0 : index
    %78 = vector.load %arg4[%c0_23, %c0_24] : memref<1x32xf32, #tpu.memory_space<vmem>>, vector<1x32xf32>
    %79 = vector.broadcast %78 : vector<1x32xf32> to vector<8x32xf32>
    %80 = arith.addf %77, %79 : vector<8x32xf32>
    %81 = vector.shape_cast %80 : vector<8x32xf32> to vector<1x8x32xf32>
    %c0_25 = arith.constant 0 : index
    %c0_26 = arith.constant 0 : index
    %c0_27 = arith.constant 0 : index
    %82 = vector.load %arg5[%c0_25, %c0_26, %c0_27] : memref<1x8x32xf32, #tpu.memory_space<vmem>>, vector<1x8x32xf32>
    tpu.vector_store %arg5[%c0_25, %c0_26, %c0_27], %81 {strides = array<i32>} : memref<1x8x32xf32, #tpu.memory_space<vmem>>, vector<1x8x32xf32>,
    return
  }
  func.func @transform_0(%arg0: i32) -> (i32, i32, i32) {
    %c0_i32 = arith.constant 0 : i32
    %c0_i32_0 = arith.constant 0 : i32
    %c0_i32_1 = arith.constant 0 : i32
    return %arg0, %c0_i32, %c0_i32_0 : i32, i32, i32
  }
  func.func @transform_1(%arg0: i32) -> (i32, i32) {
    %c0_i32 = arith.constant 0 : i32
    %c0_i32_0 = arith.constant 0 : i32
    %c0_i32_1 = arith.constant 0 : i32
    return %c0_i32, %c0_i32_0 : i32, i32
  }
  func.func @transform_2(%arg0: i32) -> (i32, i32) {
    %c0_i32 = arith.constant 0 : i32
    %c0_i32_0 = arith.constant 0 : i32
    %c0_i32_1 = arith.constant 0 : i32
    return %c0_i32, %c0_i32_0 : i32, i32
  }
  func.func @transform_3(%arg0: i32) -> (i32, i32) {
    %c0_i32 = arith.constant 0 : i32
    %c0_i32_0 = arith.constant 0 : i32
    %c0_i32_1 = arith.constant 0 : i32
    return %c0_i32, %c0_i32_0 : i32, i32
  }
  func.func @transform_4(%arg0: i32) -> (i32, i32, i32) {
    %c0_i32 = arith.constant 0 : i32
    %c0_i32_0 = arith.constant 0 : i32
    %c0_i32_1 = arith.constant 0 : i32
    return %arg0, %c0_i32, %c0_i32_0 : i32, i32, i32
  }
}

</mosaic_0001>

<llo_original>
// kernel: tpu_custom_call.1
$region0: #{tpu_custom_call.1}
  #allocation0 [shape = 'u32[]', space=smem, size = 0x4, offset = 0x4, fixed_abs, tag = 'smem constant byte address 0x4 - core index']
  #allocation1 [shape = 'u32[72,128]{1,0:T(1,128)}', space=vmem, size = 0x9000, scoped, tag = 'internal scratch']
  %s0 = inlined_call_operand.hbm [shape: bf16[2,8,32], index: 0, kind: input, shape index: {}]
  %s1 = inlined_call_operand.hbm [shape: bf16[32,96], index: 1, kind: input, shape index: {}]
  %s2 = inlined_call_operand.hbm [shape: bf16[32,32], index: 2, kind: input, shape index: {}]
  %s3 = inlined_call_operand.vmem [shape: f32[1,32], index: 3, kind: input, shape index: {}]
  %s4 = inlined_call_operand.hbm [shape: f32[2,8,32], index: 4, kind: output, shape index: {}]
  %s5 = sld [smem:[#allocation0]]
  $region61: #{tpu_custom_call.1} parent=0
    _
  %s7 = ssub.s32 1, %s5
  %s8 = scalar_select 0, %s7, %s5
  $region1: #{tpu_custom_call.1} parent=0
    #allocation2 [shape = 'u8[4096]{0}', space=vmem, size = 0x1000, scoped, tag = 'input window, operand 0']
    #allocation3 [shape = 's32[2]{0}', space=sflag, size = 0x8, scoped, tag = 'scoped memory for tpu_custom_call.1']
    #allocation4 [shape = 's32[2]{0}', space=sflag, size = 0x8, scoped, tag = 'scoped memory for tpu_custom_call.1']
    #allocation5 [shape = 'u8[8192]{0}', space=vmem, size = 0x2000, scoped, tag = 'input window, operand 1, single buffered']
    #allocation6 [shape = 's32[1]{0}', space=sflag, size = 0x4, scoped, tag = 'scoped memory for tpu_custom_call.1']
    #allocation7 [shape = 'u8[8192]{0}', space=vmem, size = 0x2000, scoped, tag = 'input window, operand 2, single buffered']
    #allocation8 [shape = 'u8[8192]{0}', space=vmem, size = 0x2000, scoped, tag = 'output window, operand 0']
    %9 = vsyncpa [#allocation3], 0
    %s10 = scalar_lea.sflag [#allocation3], 1
    %11 = vsyncpa %s10, 0
    %12 = vsyncpa [#allocation6], 0
    %13 = vsyncpa [#allocation4], 0
    %s14 = scalar_lea.sflag [#allocation4], 1
    %15 = vsyncpa %s14, 0
    loop: start=0, step=1, limit=4
    $region2: #{tpu_custom_call.1} parent=1 // loop_pre_header
      _
    $region3: #{tpu_custom_call.1} parent=1 // loop_header
      %s17 = sphi 0, %s21
      %p18 = scmp.ge.s32.totalorder %s17, 4
      %s27 = sphi 0, %s29
      %s30 = sphi 0, %s27
      %s31 = sphi 0, %s30
      %s47 = sphi 0, %s31
      %s51 = sphi 0, %s51
      %s53 = sphi 0, %s51
      %s54 = sphi 0, %s53
      %s68 = sphi 0, %s54
      %s72 = sphi 0, %s72
      %s74 = sphi 0, %s72
      %s75 = sphi 0, %s74
      %s89 = sphi 0, %s75
      %s93 = sphi 0, %s93
      %s95 = sphi 0, %s93
      %s96 = sphi 0, %s95
      %s110 = sphi 0, %s96
      %s116 = sphi 0, %s118
      %s119 = sphi 0, %s116
      %s120 = sphi 0, %s119
      %s136 = sphi 0, %s120
    $region4: #{tpu_custom_call.1} parent=1 // loop_header_branch
      %20 = sbr.rel (%p18) target = $region8
    $region5: #{tpu_custom_call.1} parent=1 // loop_body
      %s22 = ssub.s32 %s17, 1
      %s23 = ssub.s32 %s17, 2
      %s24 = sadd.s32 %s17, 1
      %s25 = ssub.s32 %s17, %s24
      %p26 = scmp.eq.s32.totalorder %s25, 0
      %s28 = sadd.s32 %s27, 1
      %s29 = scalar_select %p26, %s27, %s28
      %p32 = pneg %p26
      %p33 = scmp.eq.s32.totalorder %s17, 1
      %p34 = por %p32, %p33
      %p35 = scmp.ne.s32.totalorder %s27, %s30
      %p36 = scmp.eq.s32.totalorder %s17, 0
      %p37 = por %p35, %p36
      %p38 = scmp.ne.s32.totalorder %s27, %s30
      %p39 = scmp.eq.s32.totalorder %s22, 1
      %p40 = por %p38, %p39
      %p41 = scmp.ne.s32.totalorder %s30, %s31
      %p42 = scmp.eq.s32.totalorder %s22, 0
      %p43 = por %p41, %p42
      %p44 = scmp.ne.s32.totalorder %s30, %s31
      %p45 = scmp.eq.s32.totalorder %s23, 1
      %p46 = por %p44, %p45
      %p48 = scmp.ne.s32.totalorder %s31, %s47
      %p49 = scmp.eq.s32.totalorder %s23, 0
      %p50 = por %p48, %p49
      %s52 = sadd.s32 %s51, 1
      %p55 = scmp.eq.s32.totalorder %s17, 1
      %p56 = scmp.ne.s32.totalorder %s51, %s53
      %p57 = scmp.eq.s32.totalorder %s17, 0
      %p58 = por %p56, %p57
      %p59 = scmp.ne.s32.totalorder %s51, %s53
      %p60 = scmp.eq.s32.totalorder %s22, 1
      %p61 = por %p59, %p60
      %p62 = scmp.ne.s32.totalorder %s53, %s54
      %p63 = scmp.eq.s32.totalorder %s22, 0
      %p64 = por %p62, %p63
      %p65 = scmp.ne.s32.totalorder %s53, %s54
      %p66 = scmp.eq.s32.totalorder %s23, 1
      %p67 = por %p65, %p66
      %p69 = scmp.ne.s32.totalorder %s54, %s68
      %p70 = scmp.eq.s32.totalorder %s23, 0
      %p71 = por %p69, %p70
      %s73 = sadd.s32 %s72, 1
      %p76 = scmp.eq.s32.totalorder %s17, 1
      %p77 = scmp.ne.s32.totalorder %s72, %s74
      %p78 = scmp.eq.s32.totalorder %s17, 0
      %p79 = por %p77, %p78
      %p80 = scmp.ne.s32.totalorder %s72, %s74
      %p81 = scmp.eq.s32.totalorder %s22, 1
      %p82 = por %p80, %p81
      %p83 = scmp.ne.s32.totalorder %s74, %s75
      %p84 = scmp.eq.s32.totalorder %s22, 0
      %p85 = por %p83, %p84
      %p86 = scmp.ne.s32.totalorder %s74, %s75
      %p87 = scmp.eq.s32.totalorder %s23, 1
      %p88 = por %p86, %p87
      %p90 = scmp.ne.s32.totalorder %s75, %s89
      %p91 = scmp.eq.s32.totalorder %s23, 0
      %p92 = por %p90, %p91
      %s94 = sadd.s32 %s93, 1
      %p97 = scmp.eq.s32.totalorder %s17, 1
      %p98 = scmp.ne.s32.totalorder %s93, %s95
      %p99 = scmp.eq.s32.totalorder %s17, 0
      %p100 = por %p98, %p99
      %p101 = scmp.ne.s32.totalorder %s93, %s95
      %p102 = scmp.eq.s32.totalorder %s22, 1
      %p103 = por %p101, %p102
      %p104 = scmp.ne.s32.totalorder %s95, %s96
      %p105 = scmp.eq.s32.totalorder %s22, 0
      %p106 = por %p104, %p105
      %p107 = scmp.ne.s32.totalorder %s95, %s96
      %p108 = scmp.eq.s32.totalorder %s23, 1
      %p109 = por %p107, %p108
      %p111 = scmp.ne.s32.totalorder %s96, %s110
      %p112 = scmp.eq.s32.totalorder %s23, 0
      %p113 = por %p111, %p112
      %s114 = ssub.s32 %s17, %s24
      %p115 = scmp.eq.s32.totalorder %s114, 0
      %s117 = sadd.s32 %s116, 1
      %s118 = scalar_select %p115, %s116, %s117
      %p121 = pneg %p115
      %p122 = scmp.eq.s32.totalorder %s17, 1
      %p123 = por %p121, %p122
      %p124 = scmp.ne.s32.totalorder %s116, %s119
      %p125 = scmp.eq.s32.totalorder %s17, 0
      %p126 = por %p124, %p125
      %p127 = scmp.ne.s32.totalorder %s116, %s119
      %p128 = scmp.eq.s32.totalorder %s22, 1
      %p129 = por %p127, %p128
      %p130 = scmp.ne.s32.totalorder %s119, %s120
      %p131 = scmp.eq.s32.totalorder %s22, 0
      %p132 = por %p130, %p131
      %p133 = scmp.ne.s32.totalorder %s119, %s120
      %p134 = scmp.eq.s32.totalorder %s23, 1
      %p135 = por %p133, %p134
      %p137 = scmp.ne.s32.totalorder %s120, %s136
      %p138 = scmp.eq.s32.totalorder %s23, 0
      %p139 = por %p137, %p138
      %p140 = scmp.le.s32.totalorder 1, %s17
      %p141 = scmp.lt.s32.totalorder %s17, 3
      %p142 = pnand %p140, %p141
      %p143 = pneg %p142
      // Predicated region
      $region9: #{tpu_custom_call.1} parent=5 // pred_check
        _
      $region10: #{tpu_custom_call.1} parent=5 // pred_check_branch
        %145 = sbr.rel (%p142) target = $region12
      $region11: #{tpu_custom_call.1} parent=5 // pred_region
        %s146 = ssub.s32 %s17, 1
        // Predicated region
        $region13: #{tpu_custom_call.1} parent=11 // pred_check
          %p147 = pneg %p64
        $region14: #{tpu_custom_call.1} parent=11 // pred_check_branch
          %149 = sbr.rel (%p147) target = $region16
        $region15: #{tpu_custom_call.1} parent=11 // pred_region
          %151 = vsyncadd [#allocation6], 0
          %s152 = sshll.u32 %s1, 4
          %s153 = int_to_ptr.hbm [resolvable:$true] %s152
          %s154 = sshll.u32 [#allocation5], 4
          %s155 = int_to_ptr.vmem [resolvable:$true] %s154
          %160 = dma.hbm_to_vmem [thread:$0]  %s153, 256, %s155, [#allocation6], 64, 64, 4
        $region16: #{tpu_custom_call.1} parent=11 // pred_fallthru
          _
        // Predicated region
        $region17: #{tpu_custom_call.1} parent=11 // pred_check
          %p161 = pneg %p85
        $region18: #{tpu_custom_call.1} parent=11 // pred_check_branch
          %163 = sbr.rel (%p161) target = $region20
        $region19: #{tpu_custom_call.1} parent=11 // pred_region
          %165 = vsyncadd [#allocation6], 0
          %s166 = sshll.u32 %s2, 4
          %s167 = int_to_ptr.hbm [resolvable:$true] %s166
          %s168 = sshll.u32 [#allocation7], 4
          %s169 = int_to_ptr.vmem [resolvable:$true] %s168
          %174 = dma.hbm_to_vmem [thread:$0]  %s167, 256, %s169, [#allocation6], 64, 64, 4
        $region20: #{tpu_custom_call.1} parent=11 // pred_fallthru
          _
        // Predicated region
        $region21: #{tpu_custom_call.1} parent=11 // pred_check
          %p175 = pneg %p106
        $region22: #{tpu_custom_call.1} parent=11 // pred_check_branch
          %177 = sbr.rel (%p175) target = $region24
        $region23: #{tpu_custom_call.1} parent=11 // pred_region
          _
        $region24: #{tpu_custom_call.1} parent=11 // pred_fallthru
          _
      $region12: #{tpu_custom_call.1} parent=5 // pred_fallthru
        _
      %p178 = scmp.lt.s32.totalorder %s17, 2
      // Predicated region
      $region25: #{tpu_custom_call.1} parent=5 // pred_check
        %p179 = pneg %p178
      $region26: #{tpu_custom_call.1} parent=5 // pred_check_branch
        %181 = sbr.rel (%p179) target = $region28
      $region27: #{tpu_custom_call.1} parent=5 // pred_region
        // Predicated region
        $region29: #{tpu_custom_call.1} parent=27 // pred_check
          %p182 = pneg %p37
        $region30: #{tpu_custom_call.1} parent=27 // pred_check_branch
          %184 = sbr.rel (%p182) target = $region32
        $region31: #{tpu_custom_call.1} parent=27 // pred_region
          %s185 = sand.u32 %s27, 1
          %s186 = scalar_lea.sflag [#allocation3], %s185
          %s187 = sand.u32 %s27, 1
          %s188 = smul.addr %s187, 4
          %s189 = scalar_lea.vmem [#allocation2], %s188
          %191 = vsyncadd %s186, 0
          %s192 = smul.addr %s17, 4
          %s193 = scalar_lea.hbm %s0, %s192
          %s195 = sshll.u32 %s193, 4
          %s196 = int_to_ptr.hbm [resolvable:$true] %s195
          %s197 = sshll.u32 %s189, 4
          %s198 = int_to_ptr.vmem [resolvable:$true] %s197
          %200 = dma.hbm_to_vmem [thread:$0]  %s196, 64, %s198, %s186
        $region32: #{tpu_custom_call.1} parent=27 // pred_fallthru
          _
      $region28: #{tpu_custom_call.1} parent=5 // pred_fallthru
        _
      %p201 = scmp.le.s32.totalorder 1, %s17
      %p202 = scmp.lt.s32.totalorder %s17, 3
      %p203 = pnand %p201, %p202
      %p204 = pneg %p203
      // Predicated region
      $region33: #{tpu_custom_call.1} parent=5 // pred_check
        _
      $region34: #{tpu_custom_call.1} parent=5 // pred_check_branch
        %206 = sbr.rel (%p203) target = $region36
      $region35: #{tpu_custom_call.1} parent=5 // pred_region
        %s207 = ssub.s32 %s17, 1
        %s208 = sand.u32 %s30, 1
        %s209 = scalar_lea.sflag [#allocation3], %s208
        %s210 = sand.u32 %s30, 1
        %s211 = smul.addr %s210, 4
        %s212 = scalar_lea.vmem [#allocation2], %s211
        // Predicated region
        $region37: #{tpu_custom_call.1} parent=35 // pred_check
          %p213 = pneg %p43
        $region38: #{tpu_custom_call.1} parent=35 // pred_check_branch
          %215 = sbr.rel (%p213) target = $region40
        $region39: #{tpu_custom_call.1} parent=35 // pred_region
          %217 = dma.done %s209, 64
        $region40: #{tpu_custom_call.1} parent=35 // pred_fallthru
          _
        // Predicated region
        $region41: #{tpu_custom_call.1} parent=35 // pred_check
          %p218 = pneg %p64
        $region42: #{tpu_custom_call.1} parent=35 // pred_check_branch
          %220 = sbr.rel (%p218) target = $region44
        $region43: #{tpu_custom_call.1} parent=35 // pred_region
          %222 = dma.done [#allocation6], 256
        $region44: #{tpu_custom_call.1} parent=35 // pred_fallthru
          _
        // Predicated region
        $region45: #{tpu_custom_call.1} parent=35 // pred_check
          %p223 = pneg %p85
        $region46: #{tpu_custom_call.1} parent=35 // pred_check_branch
          %225 = sbr.rel (%p223) target = $region48
        $region47: #{tpu_custom_call.1} parent=35 // pred_region
          %227 = dma.done [#allocation6], 256
        $region48: #{tpu_custom_call.1} parent=35 // pred_fallthru
          _
        %s228 = sand.u32 %s30, 1
        %s229 = scalar_lea.sflag [#allocation3], %s228
        %s230 = sand.u32 %s30, 1
        %s231 = smul.addr %s230, 4
        %s232 = scalar_lea.vmem [#allocation2], %s231
        %p233 = pneg %p43
        %p234 = pneg %p40
        %p235 = pneg %p64
        %p236 = pneg %p61
        %p237 = pneg %p85
        %p238 = pneg %p82
        %p239 = pneg %p106
        %p240 = pneg %p103
        %p241 = pneg %p132
        %p242 = pneg %p129
        %s243 = sand.u32 %s119, 1
        %s244 = scalar_lea.sflag [#allocation4], %s243
        %s245 = sand.u32 %s119, 1
        %s246 = smul.addr %s245, 8
        %s247 = scalar_lea.vmem [#allocation8], %s246
        %v249 = vld [vmem:[%s212] sm:$0xf]
        %v250 = vld [vmem:[#allocation5] sm:$0xf]
        %v251 = vld [vmem:[#allocation5 + $0x4] sm:$0xf]
        %v252 = vld [vmem:[#allocation5 + $0x8] sm:$0xf]
        %v253 = vld [vmem:[#allocation5 + $0xc] sm:$0xf]
        %v258 = vunpack.c.l.b16 %v250
        %v259 = vunpack.c.l.b16 %v251
        %v260 = vunpack.c.l.b16 %v252
        %v261 = vunpack.c.l.b16 %v253
        %v262 = vpack.c.b16 %v259, %v258
        %v263 = vpack.c.b16 %v261, %v260
        %vm266 = vcmask 261120
        %v268 = vsel %vm266, %v249, 0
        %270 = vmatpush.bf16.msra.mxu0 0
        %271 = vmatpush.bf16.msra.mxu0 0
        %272 = vmatpush.bf16.msra.mxu0 0
        %273 = vmatpush.bf16.msra.mxu0 0
        %274 = vmatpush.bf16.msra.mxu0 0
        %275 = vmatpush.bf16.msra.mxu0 0
        %276 = vmatpush.bf16.msra.mxu0 %v263
        %277 = vmatpush.bf16.msra.mxu0 %v262
        %278 = vmatmul.bf16.gmra.mxu0 %v268
        %v279 = vpop.f32.mrf.mxu0
        %v280 = vadd.f32 0.0, %v279
        %v281 = vpop.f32.mrf.mxu0
        %282 = vdwg.mxu0
        %v283 = vpack.c.bf16 %v280, %v280
        %v285 = vunpack.c.l.b16 %v283
        %v286 = vpack.c.b16 %v285, %v285
        %287 = vrot.lane.b32.xlu0 %v286, 96
        %v288 = vpop.permute.xlu0 %287
        %vm289 = vcmask 64512
        %v291 = vsel %vm289, %v283, 0
        %v294 = vsel %vm289, %v288, 0
        %296 = vmatpush.bf16.xpose.msra.mxu0 0
        %297 = vmatpush.bf16.xpose.msra.mxu0 0
        %298 = vmatpush.bf16.xpose.msra.mxu0 0
        %299 = vmatpush.bf16.xpose.msra.mxu0 0
        %300 = vmatpush.bf16.xpose.msra.mxu0 0
        %301 = vmatpush.bf16.xpose.msra.mxu0 0
        %302 = vmatpush.bf16.xpose.msra.mxu0 0
        %303 = vmatpush.bf16.xpose.msra.mxu0 %v294
        %304 = vmatmul.bf16.gmra.mxu0 %v291
        %v305 = vpop.f32.mrf.mxu0
        %v306 = vadd.f32 0.0, %v305
        %v307 = vpop.f32.mrf.mxu0
        %308 = vdwg.mxu0
        %v309 = vsel %vm289, %v306, -inf
        %310 = vmax.xlane.f32.xlu0 %v309
        %v311 = vpop.xlane.xlu0 %310
        %v312 = vsub.f32 %v306, %v311
        %v313 = vmul.f32 %v312, 1.442695
        %v314 = vpow.pop %v313
        %v315 = vpack.c.bf16 %v314, %v314
        %316 = vrot.lane.b32.xlu0 %v286, 64
        %v317 = vpop.permute.xlu0 %316
        %v319 = vsel %vm289, %v315, 0
        %vm321 = vcmask 1043456
        %v323 = vsel %vm321, %v317, 0
        %325 = vmatpush.bf16.msra.mxu0 0
        %326 = vmatpush.bf16.msra.mxu0 0
        %327 = vmatpush.bf16.msra.mxu0 0
        %328 = vmatpush.bf16.msra.mxu0 0
        %329 = vmatpush.bf16.msra.mxu0 0
        %330 = vmatpush.bf16.msra.mxu0 0
        %331 = vmatpush.bf16.msra.mxu0 0
        %332 = vmatpush.bf16.msra.mxu0 %v323
        %333 = vmatmul.bf16.gmra.mxu0 %v319
        %v334 = vpop.f32.mrf.mxu0
        %v335 = vadd.f32 0.0, %v334
        %v336 = vpop.f32.mrf.mxu0
        %337 = vdwg.mxu0
        %v338 = vsel %vm289, %v314, 0.0
        %339 = vadd.xlane.f32.xlu0 %v338
        %v340 = vpop.xlane.xlu0 %339
        %v341 = vrcp.pop %v340
        %v342 = vmul.f32 %v335, %v341
        %343 = vrot.lane.b32.xlu0 %v286, 120
        %v344 = vpop.permute.xlu0 %343
        %345 = vrot.lane.b32.xlu0 %v286, 88
        %v346 = vpop.permute.xlu0 %345
        %v348 = vsel %vm289, %v344, 0
        %v351 = vsel %vm289, %v346, 0
        %353 = vmatpush.bf16.xpose.msra.mxu0 0
        %354 = vmatpush.bf16.xpose.msra.mxu0 0
        %355 = vmatpush.bf16.xpose.msra.mxu0 0
        %356 = vmatpush.bf16.xpose.msra.mxu0 0
        %357 = vmatpush.bf16.xpose.msra.mxu0 0
        %358 = vmatpush.bf16.xpose.msra.mxu0 0
        %359 = vmatpush.bf16.xpose.msra.mxu0 0
        %360 = vmatpush.bf16.xpose.msra.mxu0 %v351
        %361 = vmatmul.bf16.gmra.mxu0 %v348
        %v362 = vpop.f32.mrf.mxu0
        %v363 = vadd.f32 0.0, %v362
        %v364 = vpop.f32.mrf.mxu0
        %365 = vdwg.mxu0
        %v366 = vsel %vm289, %v363, -inf
        %367 = vmax.xlane.f32.xlu0 %v366
        %v368 = vpop.xlane.xlu0 %367
        %v369 = vsub.f32 %v363, %v368
        %v370 = vmul.f32 %v369, 1.442695
        %v371 = vpow.pop %v370
        %v372 = vpack.c.bf16 %v371, %v371
        %373 = vrot.lane.b32.xlu0 %v286, 56
        %v374 = vpop.permute.xlu0 %373
        %v376 = vsel %vm289, %v372, 0
        %v379 = vsel %vm321, %v374, 0
        %381 = vmatpush.bf16.msra.mxu0 0
        %382 = vmatpush.bf16.msra.mxu0 0
        %383 = vmatpush.bf16.msra.mxu0 0
        %384 = vmatpush.bf16.msra.mxu0 0
        %385 = vmatpush.bf16.msra.mxu0 0
        %386 = vmatpush.bf16.msra.mxu0 0
        %387 = vmatpush.bf16.msra.mxu0 0
        %388 = vmatpush.bf16.msra.mxu0 %v379
        %389 = vmatmul.bf16.gmra.mxu0 %v376
        %v390 = vpop.f32.mrf.mxu0
        %v391 = vadd.f32 0.0, %v390
        %v392 = vpop.f32.mrf.mxu0
        %393 = vdwg.mxu0
        %v394 = vsel %vm289, %v371, 0.0
        %395 = vadd.xlane.f32.xlu0 %v394
        %v396 = vpop.xlane.xlu0 %395
        %v397 = vrcp.pop %v396
        %v398 = vmul.f32 %v391, %v397
        %399 = vrot.lane.b32.xlu0 %v286, 112
        %v400 = vpop.permute.xlu0 %399
        %401 = vrot.lane.b32.xlu0 %v286, 80
        %v402 = vpop.permute.xlu0 %401
        %v404 = vsel %vm289, %v400, 0
        %v407 = vsel %vm289, %v402, 0
        %409 = vmatpush.bf16.xpose.msra.mxu0 0
        %410 = vmatpush.bf16.xpose.msra.mxu0 0
        %411 = vmatpush.bf16.xpose.msra.mxu0 0
        %412 = vmatpush.bf16.xpose.msra.mxu0 0
        %413 = vmatpush.bf16.xpose.msra.mxu0 0
        %414 = vmatpush.bf16.xpose.msra.mxu0 0
        %415 = vmatpush.bf16.xpose.msra.mxu0 0
        %416 = vmatpush.bf16.xpose.msra.mxu0 %v407
        %417 = vmatmul.bf16.gmra.mxu0 %v404
        %v418 = vpop.f32.mrf.mxu0
        %v419 = vadd.f32 0.0, %v418
        %v420 = vpop.f32.mrf.mxu0
        %421 = vdwg.mxu0
        %v422 = vsel %vm289, %v419, -inf
        %423 = vmax.xlane.f32.xlu0 %v422
        %v424 = vpop.xlane.xlu0 %423
        %v425 = vsub.f32 %v419, %v424
        %v426 = vmul.f32 %v425, 1.442695
        %v427 = vpow.pop %v426
        %v428 = vpack.c.bf16 %v427, %v427
        %429 = vrot.lane.b32.xlu0 %v286, 48
        %v430 = vpop.permute.xlu0 %429
        %v432 = vsel %vm289, %v428, 0
        %v435 = vsel %vm321, %v430, 0
        %437 = vmatpush.bf16.msra.mxu0 0
        %438 = vmatpush.bf16.msra.mxu0 0
        %439 = vmatpush.bf16.msra.mxu0 0
        %440 = vmatpush.bf16.msra.mxu0 0
        %441 = vmatpush.bf16.msra.mxu0 0
        %442 = vmatpush.bf16.msra.mxu0 0
        %443 = vmatpush.bf16.msra.mxu0 0
        %444 = vmatpush.bf16.msra.mxu0 %v435
        %445 = vmatmul.bf16.gmra.mxu0 %v432
        %v446 = vpop.f32.mrf.mxu0
        %v447 = vadd.f32 0.0, %v446
        %v448 = vpop.f32.mrf.mxu0
        %449 = vdwg.mxu0
        %v450 = vsel %vm289, %v427, 0.0
        %451 = vadd.xlane.f32.xlu0 %v450
        %v452 = vpop.xlane.xlu0 %451
        %v453 = vrcp.pop %v452
        %v454 = vmul.f32 %v447, %v453
        %455 = vrot.lane.b32.xlu0 %v286, 104
        %v456 = vpop.permute.xlu0 %455
        %457 = vrot.lane.b32.xlu0 %v286, 72
        %v458 = vpop.permute.xlu0 %457
        %v460 = vsel %vm289, %v456, 0
        %v463 = vsel %vm289, %v458, 0
        %465 = vmatpush.bf16.xpose.msra.mxu0 0
        %466 = vmatpush.bf16.xpose.msra.mxu0 0
        %467 = vmatpush.bf16.xpose.msra.mxu0 0
        %468 = vmatpush.bf16.xpose.msra.mxu0 0
        %469 = vmatpush.bf16.xpose.msra.mxu0 0
        %470 = vmatpush.bf16.xpose.msra.mxu0 0
        %471 = vmatpush.bf16.xpose.msra.mxu0 0
        %472 = vmatpush.bf16.xpose.msra.mxu0 %v463
        %473 = vmatmul.bf16.gmra.mxu0 %v460
        %v474 = vpop.f32.mrf.mxu0
        %v475 = vadd.f32 0.0, %v474
        %v476 = vpop.f32.mrf.mxu0
        %477 = vdwg.mxu0
        %v478 = vsel %vm289, %v475, -inf
        %479 = vmax.xlane.f32.xlu0 %v478
        %v480 = vpop.xlane.xlu0 %479
        %v481 = vsub.f32 %v475, %v480
        %v482 = vmul.f32 %v481, 1.442695
        %v483 = vpow.pop %v482
        %v484 = vpack.c.bf16 %v483, %v483
        %485 = vrot.lane.b32.xlu0 %v286, 40
        %v486 = vpop.permute.xlu0 %485
        %v488 = vsel %vm289, %v484, 0
        %v491 = vsel %vm321, %v486, 0
        %493 = vmatpush.bf16.msra.mxu0 0
        %494 = vmatpush.bf16.msra.mxu0 0
        %495 = vmatpush.bf16.msra.mxu0 0
        %496 = vmatpush.bf16.msra.mxu0 0
        %497 = vmatpush.bf16.msra.mxu0 0
        %498 = vmatpush.bf16.msra.mxu0 0
        %499 = vmatpush.bf16.msra.mxu0 0
        %500 = vmatpush.bf16.msra.mxu0 %v491
        %501 = vmatmul.bf16.gmra.mxu0 %v488
        %v502 = vpop.f32.mrf.mxu0
        %v503 = vadd.f32 0.0, %v502
        %v504 = vpop.f32.mrf.mxu0
        %505 = vdwg.mxu0
        %v506 = vsel %vm289, %v483, 0.0
        %507 = vadd.xlane.f32.xlu0 %v506
        %v508 = vpop.xlane.xlu0 %507
        %v509 = vrcp.pop %v508
        %v510 = vmul.f32 %v503, %v509
        %512 = vrot.lane.b32.xlu0 %v398, 8
        %v513 = vpop.permute.xlu0 %512
        %516 = vrot.lane.b32.xlu0 %v454, 16
        %v517 = vpop.permute.xlu0 %516
        %520 = vrot.lane.b32.xlu0 %v510, 24
        %v521 = vpop.permute.xlu0 %520
        %v523 = vsel %vm289, %v342, %v513
        %vm524 = vcmask 130048
        %v525 = vsel %vm524, %v523, %v517
        %vm526 = vcmask 195584
        %v527 = vsel %vm526, %v525, %v521
        %v528 = vpack.c.bf16 %v527, %v527
        %v529 = vld [vmem:[#allocation7] sm:$0xf]
        %v530 = vld [vmem:[#allocation7 + $0x4] sm:$0xf]
        %v531 = vld [vmem:[#allocation7 + $0x8] sm:$0xf]
        %v532 = vld [vmem:[#allocation7 + $0xc] sm:$0xf]
        %v533 = vld [vmem:[%s3] sm:$0x1]
        %v535 = vperm.slane %v533, 0
        %v541 = vunpack.c.l.b16 %v529
        %v542 = vunpack.c.l.b16 %v530
        %v543 = vunpack.c.l.b16 %v531
        %v544 = vunpack.c.l.b16 %v532
        %v545 = vpack.c.b16 %v542, %v541
        %v546 = vpack.c.b16 %v544, %v543
        %v550 = vsel %vm266, %v528, 0
        %552 = vmatpush.bf16.msra.mxu0 0
        %553 = vmatpush.bf16.msra.mxu0 0
        %554 = vmatpush.bf16.msra.mxu0 0
        %555 = vmatpush.bf16.msra.mxu0 0
        %556 = vmatpush.bf16.msra.mxu0 0
        %557 = vmatpush.bf16.msra.mxu0 0
        %558 = vmatpush.bf16.msra.mxu0 %v546
        %559 = vmatpush.bf16.msra.mxu0 %v545
        %560 = vmatmul.bf16.gmra.mxu0 %v550
        %v561 = vpop.f32.mrf.mxu0
        %v562 = vadd.f32 %v535, %v561
        %v563 = vpop.f32.mrf.mxu0
        %564 = vdwg.mxu0
        %565 = vst.msk [vmem:[%s247] sm:$0xff] %vm266, %v562
        %s566 = sand.u32 %s119, 1
        %s567 = scalar_lea.sflag [#allocation4], %s566
        %s568 = sand.u32 %s119, 1
        %s569 = smul.addr %s568, 8
        %s570 = scalar_lea.vmem [#allocation8], %s569
        // Predicated region
        $region49: #{tpu_custom_call.1} parent=35 // pred_check
          %p571 = pneg %p129
        $region50: #{tpu_custom_call.1} parent=35 // pred_check_branch
          %573 = sbr.rel (%p571) target = $region52
        $region51: #{tpu_custom_call.1} parent=35 // pred_region
          %575 = vsyncadd %s567, 0
          %s576 = smul.addr %s22, 8
          %s577 = scalar_lea.hbm %s4, %s576
          %s579 = sshll.u32 %s570, 4
          %s580 = int_to_ptr.vmem [resolvable:$true] %s579
          %s581 = sshll.u32 %s577, 4
          %s582 = int_to_ptr.hbm [resolvable:$true] %s581
          %584 = dma.vmem_to_hbm [thread:$0]  %s580, 128, %s582, %s567
        $region52: #{tpu_custom_call.1} parent=35 // pred_fallthru
          _
      $region36: #{tpu_custom_call.1} parent=5 // pred_fallthru
        _
      %p585 = scmp.le.s32.totalorder 2, %s17
      // Predicated region
      $region53: #{tpu_custom_call.1} parent=5 // pred_check
        %p586 = pneg %p585
      $region54: #{tpu_custom_call.1} parent=5 // pred_check_branch
        %588 = sbr.rel (%p586) target = $region56
      $region55: #{tpu_custom_call.1} parent=5 // pred_region
        %s589 = ssub.s32 %s17, 2
        // Predicated region
        $region57: #{tpu_custom_call.1} parent=55 // pred_check
          %p590 = pneg %p135
        $region58: #{tpu_custom_call.1} parent=55 // pred_check_branch
          %592 = sbr.rel (%p590) target = $region60
        $region59: #{tpu_custom_call.1} parent=55 // pred_region
          %s593 = sand.u32 %s120, 1
          %s594 = scalar_lea.sflag [#allocation4], %s593
          %s595 = sand.u32 %s120, 1
          %s596 = smul.addr %s595, 8
          %s597 = scalar_lea.vmem [#allocation8], %s596
          %599 = dma.done %s594, 128
        $region60: #{tpu_custom_call.1} parent=55 // pred_fallthru
          _
      $region56: #{tpu_custom_call.1} parent=5 // pred_fallthru
        _
    $region6: #{tpu_custom_call.1} parent=1 // loop_footer
      %s21 = sadd.s32 1, %s17
    $region7: #{tpu_custom_call.1} parent=1 // loop_footer_branch
      %16 = sbr.rel target = $region3
    $region8: #{tpu_custom_call.1} parent=1 // loop_exit
      _
    %600 = vsyncpa [#allocation3], 1
    %s601 = scalar_lea.sflag [#allocation3], 1
    %602 = vsyncpa %s601, 1
    %603 = vsyncpa [#allocation6], 1
    %604 = vsyncpa [#allocation4], 1
    %s605 = scalar_lea.sflag [#allocation4], 1
    %606 = vsyncpa %s605, 1

</llo_original>
